<compile_context>
chip_gen: v5e
topology: v5e:2x2
jax: 0.10.0
libtpu: 0.0.40
codegen_flags: <defaults>
</compile_context>

<pallas_src>
import math

import numpy as np
import jax
import jax.numpy as jnp
from jax.experimental import pallas as pl
from jax.experimental.pallas import tpu as pltpu

NEG_SLOPE = 0.2   # the module passes leaky_relu_negative_slope=0.2 to nn.LeakyReLU
BN_EPS = 1e-5     # nn.BatchNorm1d default eps
KSIZE, STRIDE, PAD = 3, 2, 1


def _leaky_relu(x):
    return jnp.where(x >= 0, x, NEG_SLOPE * x)


def _out_len(L):
    return (L + 2 * PAD - KSIZE) // STRIDE + 1


# ----------------------- host-side constant matrices --------------------------

def _sel_matrices(B, Li, Lo):
    """(K, B*Li, B*Lo) 0/1 matrices: X @ S[k] performs the k-th-tap, stride-2,
    pad-1 patch selection on a (channels, batch*length) activation matrix;
    out-of-range taps select nothing (implicit zero padding), and batches never
    mix because the matrices are batch-block-diagonal."""
    sel = np.zeros((KSIZE, B * Li, B * Lo), np.float32)
    for b in range(B):
        for o in range(Lo):
            for k in range(KSIZE):
                j = STRIDE * o + k - PAD
                if 0 <= j < Li:
                    sel[k, b * Li + j, b * Lo + o] = 1.0
    return jnp.asarray(sel)


# --------------------------------- kernel -------------------------------------

def encoder_kernel(x_ref, s1_ref, s2_ref, s3_ref,
                   w1_ref, w2_ref, g2_ref, b2_ref,
                   w3_ref, g3_ref, b3_ref,
                   wbig_ref, blt_ref, o_ref):
    def conv(x, s_ref, w_ref, select_first):
        # Y = sum_k W_k @ (X @ S_k)   (or (W_k @ X) @ S_k when Cout < Cin)
        acc = None
        for k in range(KSIZE):                                 # static, unrolled taps
            if select_first:
                t = jnp.dot(x, s_ref[k], preferred_element_type=jnp.float32)
                t = jnp.dot(w_ref[k], t, preferred_element_type=jnp.float32)
            else:
                t = jnp.dot(w_ref[k], x, preferred_element_type=jnp.float32)
                t = jnp.dot(t, s_ref[k], preferred_element_type=jnp.float32)
            acc = t if acc is None else acc + t
        return acc

    def batchnorm(y, g, b):
        # Training-mode batch statistics (biased variance), per channel (= row).
        mean = jnp.mean(y, axis=1, keepdims=True)
        var = jnp.mean(jnp.square(y - mean), axis=1, keepdims=True)
        return (y - mean) * jax.lax.rsqrt(var + BN_EPS) * g + b

    x0 = x_ref[...]                                                  # (1 , B*L )
    h1 = _leaky_relu(conv(x0, s1_ref, w1_ref, True))                 # (8 , B*L1)
    h2 = _leaky_relu(batchnorm(conv(h1, s2_ref, w2_ref, True),
                               g2_ref[...], b2_ref[...]))            # (16, B*L2)
    h3 = _leaky_relu(batchnorm(conv(h2, s3_ref, w3_ref, False),
                               g3_ref[...], b3_ref[...]))            # (1 , B*L3)

    # Flatten + Linear fused with a block-diagonal weight (kron(I_B, Wl)):
    # out_flat[0, b*latent + d] = sum_j h3[0, b*L3 + j] * Wl[j, d] + bl[d]
    out = jnp.dot(h3, wbig_ref[...],
                  preferred_element_type=jnp.float32) + blt_ref[...]
    o_ref[...] = _leaky_relu(out).astype(o_ref.dtype)


# ------------------------------ JAX wrapper ------------------------------------

@jax.jit
def encoder_forward(params, signal):
    B, L = signal.shape
    L1 = _out_len(L)
    L2 = _out_len(L1)
    L3 = _out_len(L2)
    latent = params["wl"].shape[1]

    x = signal.astype(jnp.float32).reshape(1, B * L)           # (1, B*L), length on lanes
    wbig = jnp.kron(jnp.eye(B, dtype=jnp.float32), params["wl"])   # (B*L3, B*latent)
    blt = jnp.tile(params["bl"], (1, B))                           # (1, B*latent)

    args = (
        x,
        _sel_matrices(B, L, L1),
        _sel_matrices(B, L1, L2),
        _sel_matrices(B, L2, L3),
        jnp.transpose(params["w1"], (2, 0, 1)),    # (K, 8, 1)   = (K, Cout, Cin)
        jnp.transpose(params["w2"], (2, 0, 1)),    # (K, 16, 8)
        params["g2"].reshape(-1, 1), params["b2"].reshape(-1, 1),   # (16, 1)
        jnp.transpose(params["w3"], (2, 0, 1)),    # (K, 1, 16)
        params["g3"].reshape(-1, 1), params["b3"].reshape(-1, 1),   # (1, 1)
        wbig, blt,
    )

    out_flat = pl.pallas_call(
        encoder_kernel,
        out_shape=jax.ShapeDtypeStruct((1, B * latent), jnp.float32),
        in_specs=[pl.BlockSpec(memory_space=pltpu.MemorySpace.VMEM)
                  for _ in args],
        out_specs=pl.BlockSpec(memory_space=pltpu.MemorySpace.VMEM),
    )(*args)
    return out_flat.reshape(B, latent)


# --------------------------- parameters / reference ---------------------------

def init_params(key, signal_dims, latent_dims):
    # Deterministic Kaiming-uniform-ish init (PyTorch-default shapes).
    ks = jax.random.split(key, 5)
    f = math.ceil(signal_dims / 8)

    def u(k, shape, fan_in):
        bound = 1.0 / math.sqrt(fan_in)
        return jax.random.uniform(k, shape, jnp.float32, -bound, bound)

    return {
        "w1": u(ks[0], (8, 1, 3), 1 * 3),
        "w2": u(ks[1], (16, 8, 3), 8 * 3),
        "g2": jnp.ones((1, 16), jnp.float32),
        "b2": jnp.zeros((1, 16), jnp.float32),
        "w3": u(ks[2], (1, 16, 3), 16 * 3),
        "g3": jnp.ones((1, 1), jnp.float32),
        "b3": jnp.zeros((1, 1), jnp.float32),
        "wl": u(ks[3], (f, latent_dims), f),
        "bl": u(ks[4], (1, latent_dims), f),
    }


def reference_forward(params, signal):
    # Pure-JAX reference (lax conv) to validate the Pallas path.
    x = signal[:, :, None]

    def conv(x, w):
        return jax.lax.conv_general_dilated(
            x, jnp.transpose(w, (2, 1, 0)), window_strides=(STRIDE,),
            padding=[(PAD, PAD)], dimension_numbers=("NWC", "WIO", "NWC"))

    def bn(x, g, b):
        mean = jnp.mean(x, axis=(0, 1), keepdims=True)
        var = jnp.mean(jnp.square(x - mean), axis=(0, 1), keepdims=True)
        return ((x - mean) * jax.lax.rsqrt(var + BN_EPS)
                * g.reshape(1, 1, -1) + b.reshape(1, 1, -1))

    x = _leaky_relu(conv(x, params["w1"]))
    x = _leaky_relu(bn(conv(x, params["w2"]), params["g2"], params["b2"]))
    x = _leaky_relu(bn(conv(x, params["w3"]), params["g3"], params["b3"]))
    flat = x.reshape(x.shape[0], -1)
    return _leaky_relu(flat @ params["wl"] + params["bl"])


if __name__ == "__main__":
    B, signal_dims, latent_dims = 2, 32, 8
    key = jax.random.PRNGKey(0)
    pkey, xkey = jax.random.split(key)
    params = init_params(pkey, signal_dims, latent_dims)
    signal = jax.random.normal(xkey, (B, signal_dims), jnp.float32)

    out = jax.block_until_ready(encoder_forward(params, signal))
    ref = jax.block_until_ready(reference_forward(params, signal))

    assert out.shape == (B, latent_dims), out.shape
    assert jnp.allclose(out, ref, atol=1e-4, rtol=1e-4), (out, ref)
    print("KERNEL_OK")
</pallas_src>

<mosaic_0001>
module attributes {stable_mosaic.version = 11 : i64} {
  func.func @encoder_kernel(%arg0: memref<1x64xf32, #tpu.memory_space<vmem>>, %arg1: memref<3x64x32xf32, #tpu.memory_space<vmem>>, %arg2: memref<3x32x16xf32, #tpu.memory_space<vmem>>, %arg3: memref<3x16x8xf32, #tpu.memory_space<vmem>>, %arg4: memref<3x8x1xf32, #tpu.memory_space<vmem>>, %arg5: memref<3x16x8xf32, #tpu.memory_space<vmem>>, %arg6: memref<16x1xf32, #tpu.memory_space<vmem>>, %arg7: memref<16x1xf32, #tpu.memory_space<vmem>>, %arg8: memref<3x1x16xf32, #tpu.memory_space<vmem>>, %arg9: memref<1x1xf32, #tpu.memory_space<vmem>>, %arg10: memref<1x1xf32, #tpu.memory_space<vmem>>, %arg11: memref<8x16xf32, #tpu.memory_space<vmem>>, %arg12: memref<1x16xf32, #tpu.memory_space<vmem>>, %arg13: memref<1x16xf32, #tpu.memory_space<vmem>>) attributes {dimension_semantics = [], scalar_prefetch = 0 : i64, scratch_operands = 0 : i64, tpu.core_type = #tpu.core_type<tc>} {
    %c0 = arith.constant 0 : index
    %c0_0 = arith.constant 0 : index
    %0 = vector.load %arg0[%c0, %c0_0] : memref<1x64xf32, #tpu.memory_space<vmem>>, vector<1x64xf32>
    %c0_1 = arith.constant 0 : index
    %c0_2 = arith.constant 0 : index
    %c0_3 = arith.constant 0 : index
    %1 = vector.load %arg1[%c0_1, %c0_2, %c0_3] : memref<3x64x32xf32, #tpu.memory_space<vmem>>, vector<1x64x32xf32>
    %2 = vector.shape_cast %1 : vector<1x64x32xf32> to vector<64x32xf32>
    %cst = arith.constant dense<0.000000e+00> : vector<1x32xf32>
    %3 = tpu.matmul %0, %2, %cst {dimension_numbers = #tpu.dot_dimension_numbers<[1], [0], [0], [1], [0, 0, 1, 1], [], []>} : vector<1x64xf32>, vector<64x32xf32>, vector<1x32xf32> -> vector<1x32xf32>
    %c0_4 = arith.constant 0 : index
    %c0_5 = arith.constant 0 : index
    %c0_6 = arith.constant 0 : index
    %4 = vector.load %arg4[%c0_4, %c0_5, %c0_6] : memref<3x8x1xf32, #tpu.memory_space<vmem>>, vector<1x8x1xf32>
    %5 = vector.shape_cast %4 : vector<1x8x1xf32> to vector<8x1xf32>
    %cst_7 = arith.constant dense<0.000000e+00> : vector<8x32xf32>
    %6 = tpu.matmul %5, %3, %cst_7 {dimension_numbers = #tpu.dot_dimension_numbers<[1], [0], [0], [1], [0, 0, 1, 1], [], []>} : vector<8x1xf32>, vector<1x32xf32>, vector<8x32xf32> -> vector<8x32xf32>
    %c1 = arith.constant 1 : index
    %c0_8 = arith.constant 0 : index
    %c0_9 = arith.constant 0 : index
    %7 = vector.load %arg1[%c1, %c0_8, %c0_9] : memref<3x64x32xf32, #tpu.memory_space<vmem>>, vector<1x64x32xf32>
    %8 = vector.shape_cast %7 : vector<1x64x32xf32> to vector<64x32xf32>
    %cst_10 = arith.constant dense<0.000000e+00> : vector<1x32xf32>
    %9 = tpu.matmul %0, %8, %cst_10 {dimension_numbers = #tpu.dot_dimension_numbers<[1], [0], [0], [1], [0, 0, 1, 1], [], []>} : vector<1x64xf32>, vector<64x32xf32>, vector<1x32xf32> -> vector<1x32xf32>
    %c1_11 = arith.constant 1 : index
    %c0_12 = arith.constant 0 : index
    %c0_13 = arith.constant 0 : index
    %10 = vector.load %arg4[%c1_11, %c0_12, %c0_13] : memref<3x8x1xf32, #tpu.memory_space<vmem>>, vector<1x8x1xf32>
    %11 = vector.shape_cast %10 : vector<1x8x1xf32> to vector<8x1xf32>
    %cst_14 = arith.constant dense<0.000000e+00> : vector<8x32xf32>
    %12 = tpu.matmul %11, %9, %cst_14 {dimension_numbers = #tpu.dot_dimension_numbers<[1], [0], [0], [1], [0, 0, 1, 1], [], []>} : vector<8x1xf32>, vector<1x32xf32>, vector<8x32xf32> -> vector<8x32xf32>
    %13 = arith.addf %6, %12 : vector<8x32xf32>
    %c2 = arith.constant 2 : index
    %c0_15 = arith.constant 0 : index
    %c0_16 = arith.constant 0 : index
    %14 = vector.load %arg1[%c2, %c0_15, %c0_16] : memref<3x64x32xf32, #tpu.memory_space<vmem>>, vector<1x64x32xf32>
    %15 = vector.shape_cast %14 : vector<1x64x32xf32> to vector<64x32xf32>
    %cst_17 = arith.constant dense<0.000000e+00> : vector<1x32xf32>
    %16 = tpu.matmul %0, %15, %cst_17 {dimension_numbers = #tpu.dot_dimension_numbers<[1], [0], [0], [1], [0, 0, 1, 1], [], []>} : vector<1x64xf32>, vector<64x32xf32>, vector<1x32xf32> -> vector<1x32xf32>
    %c2_18 = arith.constant 2 : index
    %c0_19 = arith.constant 0 : index
    %c0_20 = arith.constant 0 : index
    %17 = vector.load %arg4[%c2_18, %c0_19, %c0_20] : memref<3x8x1xf32, #tpu.memory_space<vmem>>, vector<1x8x1xf32>
    %18 = vector.shape_cast %17 : vector<1x8x1xf32> to vector<8x1xf32>
    %cst_21 = arith.constant dense<0.000000e+00> : vector<8x32xf32>
    %19 = tpu.matmul %18, %16, %cst_21 {dimension_numbers = #tpu.dot_dimension_numbers<[1], [0], [0], [1], [0, 0, 1, 1], [], []>} : vector<8x1xf32>, vector<1x32xf32>, vector<8x32xf32> -> vector<8x32xf32>
    %20 = arith.addf %13, %19 : vector<8x32xf32>
    %cst_22 = arith.constant 0.000000e+00 : f32
    %21 = vector.broadcast %cst_22 : f32 to vector<8x32xf32>
    %22 = arith.cmpf oge, %20, %21 : vector<8x32xf32>
    %cst_23 = arith.constant 2.000000e-01 : f32
    %23 = vector.broadcast %cst_23 : f32 to vector<8x32xf32>
    %24 = arith.mulf %23, %20 : vector<8x32xf32>
    %25 = arith.select %22, %20, %24 : vector<8x32xi1>, vector<8x32xf32>
    %c0_24 = arith.constant 0 : index
    %c0_25 = arith.constant 0 : index
    %c0_26 = arith.constant 0 : index
    %26 = vector.load %arg2[%c0_24, %c0_25, %c0_26] : memref<3x32x16xf32, #tpu.memory_space<vmem>>, vector<1x32x16xf32>
    %27 = vector.shape_cast %26 : vector<1x32x16xf32> to vector<32x16xf32>
    %cst_27 = arith.constant dense<0.000000e+00> : vector<8x16xf32>
    %28 = tpu.matmul %25, %27, %cst_27 {dimension_numbers = #tpu.dot_dimension_numbers<[1], [0], [0], [1], [0, 0, 1, 1], [], []>} : vector<8x32xf32>, vector<32x16xf32>, vector<8x16xf32> -> vector<8x16xf32>
    %c0_28 = arith.constant 0 : index
    %c0_29 = arith.constant 0 : index
    %c0_30 = arith.constant 0 : index
    %29 = vector.load %arg5[%c0_28, %c0_29, %c0_30] : memref<3x16x8xf32, #tpu.memory_space<vmem>>, vector<1x16x8xf32>
    %30 = vector.shape_cast %29 : vector<1x16x8xf32> to vector<16x8xf32>
    %cst_31 = arith.constant dense<0.000000e+00> : vector<16x16xf32>
    %31 = tpu.matmul %30, %28, %cst_31 {dimension_numbers = #tpu.dot_dimension_numbers<[1], [0], [0], [1], [0, 0, 1, 1], [], []>} : vector<16x8xf32>, vector<8x16xf32>, vector<16x16xf32> -> vector<16x16xf32>
    %c1_32 = arith.constant 1 : index
    %c0_33 = arith.constant 0 : index
    %c0_34 = arith.constant 0 : index
    %32 = vector.load %arg2[%c1_32, %c0_33, %c0_34] : memref<3x32x16xf32, #tpu.memory_space<vmem>>, vector<1x32x16xf32>
    %33 = vector.shape_cast %32 : vector<1x32x16xf32> to vector<32x16xf32>
    %cst_35 = arith.constant dense<0.000000e+00> : vector<8x16xf32>
    %34 = tpu.matmul %25, %33, %cst_35 {dimension_numbers = #tpu.dot_dimension_numbers<[1], [0], [0], [1], [0, 0, 1, 1], [], []>} : vector<8x32xf32>, vector<32x16xf32>, vector<8x16xf32> -> vector<8x16xf32>
    %c1_36 = arith.constant 1 : index
    %c0_37 = arith.constant 0 : index
    %c0_38 = arith.constant 0 : index
    %35 = vector.load %arg5[%c1_36, %c0_37, %c0_38] : memref<3x16x8xf32, #tpu.memory_space<vmem>>, vector<1x16x8xf32>
    %36 = vector.shape_cast %35 : vector<1x16x8xf32> to vector<16x8xf32>
    %cst_39 = arith.constant dense<0.000000e+00> : vector<16x16xf32>
    %37 = tpu.matmul %36, %34, %cst_39 {dimension_numbers = #tpu.dot_dimension_numbers<[1], [0], [0], [1], [0, 0, 1, 1], [], []>} : vector<16x8xf32>, vector<8x16xf32>, vector<16x16xf32> -> vector<16x16xf32>
    %38 = arith.addf %31, %37 : vector<16x16xf32>
    %c2_40 = arith.constant 2 : index
    %c0_41 = arith.constant 0 : index
    %c0_42 = arith.constant 0 : index
    %39 = vector.load %arg2[%c2_40, %c0_41, %c0_42] : memref<3x32x16xf32, #tpu.memory_space<vmem>>, vector<1x32x16xf32>
    %40 = vector.shape_cast %39 : vector<1x32x16xf32> to vector<32x16xf32>
    %cst_43 = arith.constant dense<0.000000e+00> : vector<8x16xf32>
    %41 = tpu.matmul %25, %40, %cst_43 {dimension_numbers = #tpu.dot_dimension_numbers<[1], [0], [0], [1], [0, 0, 1, 1], [], []>} : vector<8x32xf32>, vector<32x16xf32>, vector<8x16xf32> -> vector<8x16xf32>
    %c2_44 = arith.constant 2 : index
    %c0_45 = arith.constant 0 : index
    %c0_46 = arith.constant 0 : index
    %42 = vector.load %arg5[%c2_44, %c0_45, %c0_46] : memref<3x16x8xf32, #tpu.memory_space<vmem>>, vector<1x16x8xf32>
    %43 = vector.shape_cast %42 : vector<1x16x8xf32> to vector<16x8xf32>
    %cst_47 = arith.constant dense<0.000000e+00> : vector<16x16xf32>
    %44 = tpu.matmul %43, %41, %cst_47 {dimension_numbers = #tpu.dot_dimension_numbers<[1], [0], [0], [1], [0, 0, 1, 1], [], []>} : vector<16x8xf32>, vector<8x16xf32>, vector<16x16xf32> -> vector<16x16xf32>
    %45 = arith.addf %38, %44 : vector<16x16xf32>
    %c0_48 = arith.constant 0 : index
    %c0_49 = arith.constant 0 : index
    %46 = vector.load %arg6[%c0_48, %c0_49] : memref<16x1xf32, #tpu.memory_space<vmem>>, vector<16x1xf32>
    %c0_50 = arith.constant 0 : index
    %c0_51 = arith.constant 0 : index
    %47 = vector.load %arg7[%c0_50, %c0_51] : memref<16x1xf32, #tpu.memory_space<vmem>>, vector<16x1xf32>
    %cst_52 = arith.constant dense<0.000000e+00> : vector<16xf32>
    %48 = vector.multi_reduction <add>, %45, %cst_52 [1] : vector<16x16xf32> to vector<16xf32>
    %49 = vector.shape_cast %48 : vector<16xf32> to vector<16x1xf32>
    %cst_53 = arith.constant 1.600000e+01 : f32
    %50 = vector.broadcast %cst_53 : f32 to vector<16x1xf32>
    %51 = arith.divf %49, %50 : vector<16x1xf32>
    %52 = vector.broadcast %51 : vector<16x1xf32> to vector<16x16xf32>
    %53 = arith.subf %45, %52 : vector<16x16xf32>
    %54 = arith.mulf %53, %53 : vector<16x16xf32>
    %cst_54 = arith.constant dense<0.000000e+00> : vector<16xf32>
    %55 = vector.multi_reduction <add>, %54, %cst_54 [1] : vector<16x16xf32> to vector<16xf32>
    %56 = vector.shape_cast %55 : vector<16xf32> to vector<16x1xf32>
    %cst_55 = arith.constant 1.600000e+01 : f32
    %57 = vector.broadcast %cst_55 : f32 to vector<16x1xf32>
    %58 = arith.divf %56, %57 : vector<16x1xf32>
    %59 = vector.broadcast %51 : vector<16x1xf32> to vector<16x16xf32>
    %60 = arith.subf %45, %59 : vector<16x16xf32>
    %cst_56 = arith.constant 9.99999974E-6 : f32
    %61 = vector.broadcast %cst_56 : f32 to vector<16x1xf32>
    %62 = arith.addf %58, %61 : vector<16x1xf32>
    %63 = math.rsqrt %62 : vector<16x1xf32>
    %64 = vector.broadcast %63 : vector<16x1xf32> to vector<16x16xf32>
    %65 = arith.mulf %60, %64 : vector<16x16xf32>
    %66 = vector.broadcast %46 : vector<16x1xf32> to vector<16x16xf32>
    %67 = arith.mulf %65, %66 : vector<16x16xf32>
    %68 = vector.broadcast %47 : vector<16x1xf32> to vector<16x16xf32>
    %69 = arith.addf %67, %68 : vector<16x16xf32>
    %cst_57 = arith.constant 0.000000e+00 : f32
    %70 = vector.broadcast %cst_57 : f32 to vector<16x16xf32>
    %71 = arith.cmpf oge, %69, %70 : vector<16x16xf32>
    %cst_58 = arith.constant 2.000000e-01 : f32
    %72 = vector.broadcast %cst_58 : f32 to vector<16x16xf32>
    %73 = arith.mulf %72, %69 : vector<16x16xf32>
    %74 = arith.select %71, %69, %73 : vector<16x16xi1>, vector<16x16xf32>
    %c0_59 = arith.constant 0 : index
    %c0_60 = arith.constant 0 : index
    %c0_61 = arith.constant 0 : index
    %75 = vector.load %arg8[%c0_59, %c0_60, %c0_61] : memref<3x1x16xf32, #tpu.memory_space<vmem>>, vector<1x1x16xf32>
    %76 = vector.shape_cast %75 : vector<1x1x16xf32> to vector<1x16xf32>
    %cst_62 = arith.constant dense<0.000000e+00> : vector<1x16xf32>
    %77 = tpu.matmul %76, %74, %cst_62 {dimension_numbers = #tpu.dot_dimension_numbers<[1], [0], [0], [1], [0, 0, 1, 1], [], []>} : vector<1x16xf32>, vector<16x16xf32>, vector<1x16xf32> -> vector<1x16xf32>
    %c0_63 = arith.constant 0 : index
    %c0_64 = arith.constant 0 : index
    %c0_65 = arith.constant 0 : index
    %78 = vector.load %arg3[%c0_63, %c0_64, %c0_65] : memref<3x16x8xf32, #tpu.memory_space<vmem>>, vector<1x16x8xf32>
    %79 = vector.shape_cast %78 : vector<1x16x8xf32> to vector<16x8xf32>
    %cst_66 = arith.constant dense<0.000000e+00> : vector<1x8xf32>
    %80 = tpu.matmul %77, %79, %cst_66 {dimension_numbers = #tpu.dot_dimension_numbers<[1], [0], [0], [1], [0, 0, 1, 1], [], []>} : vector<1x16xf32>, vector<16x8xf32>, vector<1x8xf32> -> vector<1x8xf32>
    %c1_67 = arith.constant 1 : index
    %c0_68 = arith.constant 0 : index
    %c0_69 = arith.constant 0 : index
    %81 = vector.load %arg8[%c1_67, %c0_68, %c0_69] : memref<3x1x16xf32, #tpu.memory_space<vmem>>, vector<1x1x16xf32>
    %82 = vector.shape_cast %81 : vector<1x1x16xf32> to vector<1x16xf32>
    %cst_70 = arith.constant dense<0.000000e+00> : vector<1x16xf32>
    %83 = tpu.matmul %82, %74, %cst_70 {dimension_numbers = #tpu.dot_dimension_numbers<[1], [0], [0], [1], [0, 0, 1, 1], [], []>} : vector<1x16xf32>, vector<16x16xf32>, vector<1x16xf32> -> vector<1x16xf32>
    %c1_71 = arith.constant 1 : index
    %c0_72 = arith.constant 0 : index
    %c0_73 = arith.constant 0 : index
    %84 = vector.load %arg3[%c1_71, %c0_72, %c0_73] : memref<3x16x8xf32, #tpu.memory_space<vmem>>, vector<1x16x8xf32>
    %85 = vector.shape_cast %84 : vector<1x16x8xf32> to vector<16x8xf32>
    %cst_74 = arith.constant dense<0.000000e+00> : vector<1x8xf32>
    %86 = tpu.matmul %83, %85, %cst_74 {dimension_numbers = #tpu.dot_dimension_numbers<[1], [0], [0], [1], [0, 0, 1, 1], [], []>} : vector<1x16xf32>, vector<16x8xf32>, vector<1x8xf32> -> vector<1x8xf32>
    %87 = arith.addf %80, %86 : vector<1x8xf32>
    %c2_75 = arith.constant 2 : index
    %c0_76 = arith.constant 0 : index
    %c0_77 = arith.constant 0 : index
    %88 = vector.load %arg8[%c2_75, %c0_76, %c0_77] : memref<3x1x16xf32, #tpu.memory_space<vmem>>, vector<1x1x16xf32>
    %89 = vector.shape_cast %88 : vector<1x1x16xf32> to vector<1x16xf32>
    %cst_78 = arith.constant dense<0.000000e+00> : vector<1x16xf32>
    %90 = tpu.matmul %89, %74, %cst_78 {dimension_numbers = #tpu.dot_dimension_numbers<[1], [0], [0], [1], [0, 0, 1, 1], [], []>} : vector<1x16xf32>, vector<16x16xf32>, vector<1x16xf32> -> vector<1x16xf32>
    %c2_79 = arith.constant 2 : index
    %c0_80 = arith.constant 0 : index
    %c0_81 = arith.constant 0 : index
    %91 = vector.load %arg3[%c2_79, %c0_80, %c0_81] : memref<3x16x8xf32, #tpu.memory_space<vmem>>, vector<1x16x8xf32>
    %92 = vector.shape_cast %91 : vector<1x16x8xf32> to vector<16x8xf32>
    %cst_82 = arith.constant dense<0.000000e+00> : vector<1x8xf32>
    %93 = tpu.matmul %90, %92, %cst_82 {dimension_numbers = #tpu.dot_dimension_numbers<[1], [0], [0], [1], [0, 0, 1, 1], [], []>} : vector<1x16xf32>, vector<16x8xf32>, vector<1x8xf32> -> vector<1x8xf32>
    %94 = arith.addf %87, %93 : vector<1x8xf32>
    %c0_83 = arith.constant 0 : index
    %c0_84 = arith.constant 0 : index
    %95 = vector.load %arg9[%c0_83, %c0_84] : memref<1x1xf32, #tpu.memory_space<vmem>>, vector<1x1xf32>
    %c0_85 = arith.constant 0 : index
    %c0_86 = arith.constant 0 : index
    %96 = vector.load %arg10[%c0_85, %c0_86] : memref<1x1xf32, #tpu.memory_space<vmem>>, vector<1x1xf32>
    %cst_87 = arith.constant dense<0.000000e+00> : vector<1xf32>
    %97 = vector.multi_reduction <add>, %94, %cst_87 [1] : vector<1x8xf32> to vector<1xf32>
    %98 = vector.shape_cast %97 : vector<1xf32> to vector<1x1xf32>
    %cst_88 = arith.constant 8.000000e+00 : f32
    %99 = vector.broadcast %cst_88 : f32 to vector<1x1xf32>
    %100 = arith.divf %98, %99 : vector<1x1xf32>
    %101 = vector.broadcast %100 : vector<1x1xf32> to vector<1x8xf32>
    %102 = arith.subf %94, %101 : vector<1x8xf32>
    %103 = arith.mulf %102, %102 : vector<1x8xf32>
    %cst_89 = arith.constant dense<0.000000e+00> : vector<1xf32>
    %104 = vector.multi_reduction <add>, %103, %cst_89 [1] : vector<1x8xf32> to vector<1xf32>
    %105 = vector.shape_cast %104 : vector<1xf32> to vector<1x1xf32>
    %cst_90 = arith.constant 8.000000e+00 : f32
    %106 = vector.broadcast %cst_90 : f32 to vector<1x1xf32>
    %107 = arith.divf %105, %106 : vector<1x1xf32>
    %108 = vector.broadcast %100 : vector<1x1xf32> to vector<1x8xf32>
    %109 = arith.subf %94, %108 : vector<1x8xf32>
    %cst_91 = arith.constant 9.99999974E-6 : f32
    %110 = vector.broadcast %cst_91 : f32 to vector<1x1xf32>
    %111 = arith.addf %107, %110 : vector<1x1xf32>
    %112 = math.rsqrt %111 : vector<1x1xf32>
    %113 = vector.broadcast %112 : vector<1x1xf32> to vector<1x8xf32>
    %114 = arith.mulf %109, %113 : vector<1x8xf32>
    %115 = vector.broadcast %95 : vector<1x1xf32> to vector<1x8xf32>
    %116 = arith.mulf %114, %115 : vector<1x8xf32>
    %117 = vector.broadcast %96 : vector<1x1xf32> to vector<1x8xf32>
    %118 = arith.addf %116, %117 : vector<1x8xf32>
    %cst_92 = arith.constant 0.000000e+00 : f32
    %119 = vector.broadcast %cst_92 : f32 to vector<1x8xf32>
    %120 = arith.cmpf oge, %118, %119 : vector<1x8xf32>
    %cst_93 = arith.constant 2.000000e-01 : f32
    %121 = vector.broadcast %cst_93 : f32 to vector<1x8xf32>
    %122 = arith.mulf %121, %118 : vector<1x8xf32>
    %123 = arith.select %120, %118, %122 : vector<1x8xi1>, vector<1x8xf32>
    %c0_94 = arith.constant 0 : index
    %c0_95 = arith.constant 0 : index
    %124 = vector.load %arg11[%c0_94, %c0_95] : memref<8x16xf32, #tpu.memory_space<vmem>>, vector<8x16xf32>
    %cst_96 = arith.constant dense<0.000000e+00> : vector<1x16xf32>
    %125 = tpu.matmul %123, %124, %cst_96 {dimension_numbers = #tpu.dot_dimension_numbers<[1], [0], [0], [1], [0, 0, 1, 1], [], []>} : vector<1x8xf32>, vector<8x16xf32>, vector<1x16xf32> -> vector<1x16xf32>
    %c0_97 = arith.constant 0 : index
    %c0_98 = arith.constant 0 : index
    %126 = vector.load %arg12[%c0_97, %c0_98] : memref<1x16xf32, #tpu.memory_space<vmem>>, vector<1x16xf32>
    %127 = arith.addf %125, %126 : vector<1x16xf32>
    %cst_99 = arith.constant 0.000000e+00 : f32
    %128 = vector.broadcast %cst_99 : f32 to vector<1x16xf32>
    %129 = arith.cmpf oge, %127, %128 : vector<1x16xf32>
    %cst_100 = arith.constant 2.000000e-01 : f32
    %130 = vector.broadcast %cst_100 : f32 to vector<1x16xf32>
    %131 = arith.mulf %130, %127 : vector<1x16xf32>
    %132 = arith.select %129, %127, %131 : vector<1x16xi1>, vector<1x16xf32>
    %c0_101 = arith.constant 0 : index
    %c0_102 = arith.constant 0 : index
    %133 = vector.load %arg13[%c0_101, %c0_102] : memref<1x16xf32, #tpu.memory_space<vmem>>, vector<1x16xf32>
    tpu.vector_store %arg13[%c0_101, %c0_102], %132 {strides = array<i32>} : memref<1x16xf32, #tpu.memory_space<vmem>>, vector<1x16xf32>,
    return
  }
}

</mosaic_0001>

<llo_original>
// kernel: encoder_forward.1
$region0: #{encoder_forward.1}
  #allocation0 [shape = 'u32[]', space=smem, size = 0x4, offset = 0x4, fixed_abs, tag = 'smem constant byte address 0x4 - core index']
  #allocation1 [shape = 'u32[72,128]{1,0:T(1,128)}', space=vmem, size = 0x9000, scoped, tag = 'internal scratch']
  #allocation2 [shape = 'f32[1,1]{1,0:T(1,128)S(1)}', space=vmem, size = 0x200, scoped, tag = 'scoped memory for encoder_forward.1']
  #allocation3 [shape = 'f32[1,1]{1,0:T(1,128)S(1)}', space=vmem, size = 0x200, scoped, tag = 'scoped memory for encoder_forward.1']
  %s0 = inlined_call_operand.vmem [shape: f32[1,64], index: 0, kind: input, shape index: {}]
  %s1 = inlined_call_operand.hbm [shape: f32[3,64,32], index: 1, kind: input, shape index: {}]
  %s2 = inlined_call_operand.vmem [shape: f32[3,32,16], index: 2, kind: input, shape index: {}]
  %s3 = inlined_call_operand.hbm [shape: f32[3,16,8], index: 3, kind: input, shape index: {}]
  %s4 = inlined_call_operand.vmem [shape: f32[3,8,1], index: 4, kind: input, shape index: {}]
  %s5 = inlined_call_operand.vmem [shape: f32[3,16,8], index: 5, kind: input, shape index: {}]
  %s6 = inlined_call_operand.vmem [shape: f32[16,1], index: 6, kind: input, shape index: {}]
  %s7 = inlined_call_operand.vmem [shape: f32[16,1], index: 7, kind: input, shape index: {}]
  %s8 = inlined_call_operand.vmem [shape: f32[3,1,16], index: 8, kind: input, shape index: {}]
  %s9 = inlined_call_operand.<no memory space> [shape: f32[1,1], index: 9, kind: input, shape index: {}]
  %s10 = inlined_call_operand.<no memory space> [shape: f32[1,1], index: 10, kind: input, shape index: {}]
  %s11 = inlined_call_operand.vmem [shape: f32[8,16], index: 11, kind: input, shape index: {}]
  %s12 = inlined_call_operand.vmem [shape: f32[1,16], index: 12, kind: input, shape index: {}]
  %s13 = inlined_call_operand.vmem [shape: f32[1,16], index: 13, kind: output, shape index: {}]
  %s14 = sld [smem:[#allocation0]]
  $region70: #{encoder_forward.1} parent=0
    _
  %s16 = ssub.s32 1, %s14
  %s17 = scalar_select 0, %s16, %s14
  %v18 = vstv %s9
  %19 = vst [vmem:[#allocation2] sm:$0x1] %v18
  %v20 = vstv %s10
  %21 = vst [vmem:[#allocation3] sm:$0x1] %v20
  $region1: #{encoder_forward.1} parent=0
    #allocation4 [shape = 'u8[98304]{0}', space=vmem, size = 0x18000, scoped, tag = 'input window, operand 1, single buffered']
    #allocation5 [shape = 's32[1]{0}', space=sflag, size = 0x4, scoped, tag = 'scoped memory for encoder_forward.1']
    #allocation6 [shape = 'u8[24576]{0}', space=vmem, size = 0x6000, scoped, tag = 'input window, operand 3, single buffered']
    #allocation7 [shape = 's32[1]{0}', space=sflag, size = 0x4, scoped, tag = 'scoped memory for encoder_forward.1']
    %22 = vsyncpa [#allocation5], 0
    %23 = vsyncpa [#allocation7], 0
    // Predicated region
    $region2: #{encoder_forward.1} parent=1 // pred_check
      _
    $region3: #{encoder_forward.1} parent=1 // pred_check_branch
      %25 = sbr.rel (0) target = $region5
    $region4: #{encoder_forward.1} parent=1 // pred_region
      _
    $region5: #{encoder_forward.1} parent=1 // pred_fallthru
      _
    // Predicated region
    $region6: #{encoder_forward.1} parent=1 // pred_check
      _
    $region7: #{encoder_forward.1} parent=1 // pred_check_branch
      %27 = sbr.rel (0) target = $region9
    $region8: #{encoder_forward.1} parent=1 // pred_region
      %29 = vsyncadd [#allocation5], 0
      %s30 = sshll.u32 %s1, 4
      %s31 = int_to_ptr.hbm [resolvable:$true] %s30
      %s32 = sshll.u32 [#allocation4], 4
      %s33 = int_to_ptr.vmem [resolvable:$true] %s32
      %38 = dma.hbm_to_vmem [thread:$0]  %s31, 3072, %s33, [#allocation5], 128, 128, 8
    $region9: #{encoder_forward.1} parent=1 // pred_fallthru
      _
    // Predicated region
    $region10: #{encoder_forward.1} parent=1 // pred_check
      _
    $region11: #{encoder_forward.1} parent=1 // pred_check_branch
      %40 = sbr.rel (0) target = $region13
    $region12: #{encoder_forward.1} parent=1 // pred_region
      _
    $region13: #{encoder_forward.1} parent=1 // pred_fallthru
      _
    // Predicated region
    $region14: #{encoder_forward.1} parent=1 // pred_check
      _
    $region15: #{encoder_forward.1} parent=1 // pred_check_branch
      %42 = sbr.rel (0) target = $region17
    $region16: #{encoder_forward.1} parent=1 // pred_region
      %44 = vsyncadd [#allocation7], 0
      %s45 = sshll.u32 %s3, 4
      %s46 = int_to_ptr.hbm [resolvable:$true] %s45
      %s47 = sshll.u32 [#allocation6], 4
      %s48 = int_to_ptr.vmem [resolvable:$true] %s47
      %53 = dma.hbm_to_vmem [thread:$0]  %s46, 768, %s48, [#allocation7], 128, 128, 8
    $region17: #{encoder_forward.1} parent=1 // pred_fallthru
      _
    // Predicated region
    $region18: #{encoder_forward.1} parent=1 // pred_check
      _
    $region19: #{encoder_forward.1} parent=1 // pred_check_branch
      %55 = sbr.rel (0) target = $region21
    $region20: #{encoder_forward.1} parent=1 // pred_region
      _
    $region21: #{encoder_forward.1} parent=1 // pred_fallthru
      _
    // Predicated region
    $region22: #{encoder_forward.1} parent=1 // pred_check
      _
    $region23: #{encoder_forward.1} parent=1 // pred_check_branch
      %57 = sbr.rel (0) target = $region25
    $region24: #{encoder_forward.1} parent=1 // pred_region
      _
    $region25: #{encoder_forward.1} parent=1 // pred_fallthru
      _
    // Predicated region
    $region26: #{encoder_forward.1} parent=1 // pred_check
      _
    $region27: #{encoder_forward.1} parent=1 // pred_check_branch
      %59 = sbr.rel (0) target = $region29
    $region28: #{encoder_forward.1} parent=1 // pred_region
      _
    $region29: #{encoder_forward.1} parent=1 // pred_fallthru
      _
    // Predicated region
    $region30: #{encoder_forward.1} parent=1 // pred_check
      _
    $region31: #{encoder_forward.1} parent=1 // pred_check_branch
      %61 = sbr.rel (0) target = $region33
    $region32: #{encoder_forward.1} parent=1 // pred_region
      _
    $region33: #{encoder_forward.1} parent=1 // pred_fallthru
      _
    // Predicated region
    $region34: #{encoder_forward.1} parent=1 // pred_check
      _
    $region35: #{encoder_forward.1} parent=1 // pred_check_branch
      %63 = sbr.rel (0) target = $region37
    $region36: #{encoder_forward.1} parent=1 // pred_region
      _
    $region37: #{encoder_forward.1} parent=1 // pred_fallthru
      _
    // Predicated region
    $region38: #{encoder_forward.1} parent=1 // pred_check
      _
    $region39: #{encoder_forward.1} parent=1 // pred_check_branch
      %65 = sbr.rel (0) target = $region41
    $region40: #{encoder_forward.1} parent=1 // pred_region
      _
    $region41: #{encoder_forward.1} parent=1 // pred_fallthru
      _
    // Predicated region
    $region42: #{encoder_forward.1} parent=1 // pred_check
      _
    $region43: #{encoder_forward.1} parent=1 // pred_check_branch
      %67 = sbr.rel (0) target = $region45
    $region44: #{encoder_forward.1} parent=1 // pred_region
      _
    $region45: #{encoder_forward.1} parent=1 // pred_fallthru
      _
    // Predicated region
    $region46: #{encoder_forward.1} parent=1 // pred_check
      _
    $region47: #{encoder_forward.1} parent=1 // pred_check_branch
      %69 = sbr.rel (0) target = $region49
    $region48: #{encoder_forward.1} parent=1 // pred_region
      _
    $region49: #{encoder_forward.1} parent=1 // pred_fallthru
      _
    // Predicated region
    $region50: #{encoder_forward.1} parent=1 // pred_check
      _
    $region51: #{encoder_forward.1} parent=1 // pred_check_branch
      %71 = sbr.rel (0) target = $region53
    $region52: #{encoder_forward.1} parent=1 // pred_region
      _
    $region53: #{encoder_forward.1} parent=1 // pred_fallthru
      _
    // Predicated region
    $region54: #{encoder_forward.1} parent=1 // pred_check
      _
    $region55: #{encoder_forward.1} parent=1 // pred_check_branch
      %73 = sbr.rel (0) target = $region57
    $region56: #{encoder_forward.1} parent=1 // pred_region
      %75 = dma.done [#allocation5], 3072
    $region57: #{encoder_forward.1} parent=1 // pred_fallthru
      _
    // Predicated region
    $region58: #{encoder_forward.1} parent=1 // pred_check
      _
    $region59: #{encoder_forward.1} parent=1 // pred_check_branch
      %77 = sbr.rel (0) target = $region61
    $region60: #{encoder_forward.1} parent=1 // pred_region
      %79 = dma.done [#allocation7], 768
    $region61: #{encoder_forward.1} parent=1 // pred_fallthru
      _
    %v80 = vld [vmem:[%s0] sm:$0x1]
    %v81 = vld [vmem:[#allocation4] sm:$0xff]
    %v82 = vld [vmem:[#allocation4 + $0x8] sm:$0xff]
    %v83 = vld [vmem:[#allocation4 + $0x10] sm:$0xff]
    %v84 = vld [vmem:[#allocation4 + $0x18] sm:$0xff]
    %v85 = vld [vmem:[#allocation4 + $0x20] sm:$0xff]
    %v86 = vld [vmem:[#allocation4 + $0x28] sm:$0xff]
    %v87 = vld [vmem:[#allocation4 + $0x30] sm:$0xff]
    %v88 = vld [vmem:[#allocation4 + $0x38] sm:$0xff]
    %vm89 = vcmask 523264
    %v91 = vsel %vm89, %v80, 0
    %93 = vmatpush.msra.mxu0 0.0
    %94 = vmatpush.msra.mxu0 0.0
    %95 = vmatpush.msra.mxu0 0.0
    %96 = vmatpush.msra.mxu0 0.0
    %97 = vmatpush.msra.mxu0 0.0
    %98 = vmatpush.msra.mxu0 0.0
    %99 = vmatpush.msra.mxu0 0.0
    %100 = vmatpush.msra.mxu0 0.0
    %101 = vmatpush.msra.mxu0 %v88
    %102 = vmatpush.msra.mxu0 %v87
    %103 = vmatpush.msra.mxu0 %v86
    %104 = vmatpush.msra.mxu0 %v85
    %105 = vmatpush.msra.mxu0 %v84
    %106 = vmatpush.msra.mxu0 %v83
    %107 = vmatpush.msra.mxu0 %v82
    %108 = vmatpush.msra.mxu0 %v81
    %109 = vmatmul.f32.gmra.mxu0 %v91
    %v110 = vpop.f32.mrf.mxu0
    %v111 = vadd.f32 0.0, %v110
    %112 = vdwg.mxu0
    %v113 = vld [vmem:[%s4] sm:$0xff]
    %s114 = scalar_lea.vmem [#allocation4], 64
    %v115 = vld [vmem:[%s114] sm:$0xff]
    %v116 = vld [vmem:[%s114 + $0x8] sm:$0xff]
    %v117 = vld [vmem:[%s114 + $0x10] sm:$0xff]
    %v118 = vld [vmem:[%s114 + $0x18] sm:$0xff]
    %v119 = vld [vmem:[%s114 + $0x20] sm:$0xff]
    %v120 = vld [vmem:[%s114 + $0x28] sm:$0xff]
    %v121 = vld [vmem:[%s114 + $0x30] sm:$0xff]
    %v122 = vld [vmem:[%s114 + $0x38] sm:$0xff]
    %123 = vmatpush.msra.mxu0 0.0
    %124 = vmatpush.msra.mxu0 0.0
    %125 = vmatpush.msra.mxu0 0.0
    %126 = vmatpush.msra.mxu0 0.0
    %127 = vmatpush.msra.mxu0 0.0
    %128 = vmatpush.msra.mxu0 0.0
    %129 = vmatpush.msra.mxu0 0.0
    %130 = vmatpush.msra.mxu0 0.0
    %131 = vmatpush.msra.mxu0 %v122
    %132 = vmatpush.msra.mxu0 %v121
    %133 = vmatpush.msra.mxu0 %v120
    %134 = vmatpush.msra.mxu0 %v119
    %135 = vmatpush.msra.mxu0 %v118
    %136 = vmatpush.msra.mxu0 %v117
    %137 = vmatpush.msra.mxu0 %v116
    %138 = vmatpush.msra.mxu0 %v115
    %139 = vmatmul.f32.gmra.mxu0 %v91
    %v140 = vpop.f32.mrf.mxu0
    %v141 = vadd.f32 0.0, %v140
    %142 = vdwg.mxu0
    %s143 = scalar_lea.vmem %s4, 8
    %v144 = vld [vmem:[%s143] sm:$0xff]
    %vm145 = vcmask 7168
    %v147 = vsel %vm145, %v144, 0
    %vm149 = vcmask 1040384
    %v151 = vsel %vm149, %v141, 0
    %153 = vmatpush.msra.mxu0 0.0
    %154 = vmatpush.msra.mxu0 0.0
    %155 = vmatpush.msra.mxu0 0.0
    %156 = vmatpush.msra.mxu0 0.0
    %157 = vmatpush.msra.mxu0 0.0
    %158 = vmatpush.msra.mxu0 0.0
    %159 = vmatpush.msra.mxu0 0.0
    %160 = vmatpush.msra.mxu0 0.0
    %161 = vmatpush.msra.mxu0 0.0
    %162 = vmatpush.msra.mxu0 0.0
    %163 = vmatpush.msra.mxu0 0.0
    %164 = vmatpush.msra.mxu0 0.0
    %165 = vmatpush.msra.mxu0 0.0
    %166 = vmatpush.msra.mxu0 0.0
    %167 = vmatpush.msra.mxu0 0.0
    %168 = vmatpush.msra.mxu0 %v151
    %169 = vmatmul.f32.gmra.mxu0 %v147
    %v170 = vpop.f32.mrf.mxu0
    %v171 = vadd.f32 0.0, %v170
    %172 = vdwg.mxu0
    %v174 = vsel %vm145, %v113, 0
    %v177 = vsel %vm149, %v111, 0
    %179 = vmatpush.msra.mxu0 0.0
    %180 = vmatpush.msra.mxu0 0.0
    %181 = vmatpush.msra.mxu0 0.0
    %182 = vmatpush.msra.mxu0 0.0
    %183 = vmatpush.msra.mxu0 0.0
    %184 = vmatpush.msra.mxu0 0.0
    %185 = vmatpush.msra.mxu0 0.0
    %186 = vmatpush.msra.mxu0 0.0
    %187 = vmatpush.msra.mxu0 0.0
    %188 = vmatpush.msra.mxu0 0.0
    %189 = vmatpush.msra.mxu0 0.0
    %190 = vmatpush.msra.mxu0 0.0
    %191 = vmatpush.msra.mxu0 0.0
    %192 = vmatpush.msra.mxu0 0.0
    %193 = vmatpush.msra.mxu0 0.0
    %194 = vmatpush.msra.mxu0 %v177
    %195 = vmatmul.f32.gmra.mxu0 %v174
    %v196 = vpop.f32.mrf.mxu0
    %v197 = vadd.f32 %v171, %v196
    %198 = vdwg.mxu0
    %s199 = scalar_lea.vmem [#allocation4], 128
    %v200 = vld [vmem:[%s199] sm:$0xff]
    %v201 = vld [vmem:[%s199 + $0x8] sm:$0xff]
    %v202 = vld [vmem:[%s199 + $0x10] sm:$0xff]
    %v203 = vld [vmem:[%s199 + $0x18] sm:$0xff]
    %v204 = vld [vmem:[%s199 + $0x20] sm:$0xff]
    %v205 = vld [vmem:[%s199 + $0x28] sm:$0xff]
    %v206 = vld [vmem:[%s199 + $0x30] sm:$0xff]
    %v207 = vld [vmem:[%s199 + $0x38] sm:$0xff]
    %208 = vmatpush.msra.mxu0 0.0
    %209 = vmatpush.msra.mxu0 0.0
    %210 = vmatpush.msra.mxu0 0.0
    %211 = vmatpush.msra.mxu0 0.0
    %212 = vmatpush.msra.mxu0 0.0
    %213 = vmatpush.msra.mxu0 0.0
    %214 = vmatpush.msra.mxu0 0.0
    %215 = vmatpush.msra.mxu0 0.0
    %216 = vmatpush.msra.mxu0 %v207
    %217 = vmatpush.msra.mxu0 %v206
    %218 = vmatpush.msra.mxu0 %v205
    %219 = vmatpush.msra.mxu0 %v204
    %220 = vmatpush.msra.mxu0 %v203
    %221 = vmatpush.msra.mxu0 %v202
    %222 = vmatpush.msra.mxu0 %v201
    %223 = vmatpush.msra.mxu0 %v200
    %224 = vmatmul.f32.gmra.mxu0 %v91
    %v225 = vpop.f32.mrf.mxu0
    %v226 = vadd.f32 0.0, %v225
    %227 = vdwg.mxu0
    %s228 = scalar_lea.vmem %s4, 16
    %v229 = vld [vmem:[%s228] sm:$0xff]
    %v231 = vsel %vm145, %v229, 0
    %v234 = vsel %vm149, %v226, 0
    %236 = vmatpush.msra.mxu0 0.0
    %237 = vmatpush.msra.mxu0 0.0
    %238 = vmatpush.msra.mxu0 0.0
    %239 = vmatpush.msra.mxu0 0.0
    %240 = vmatpush.msra.mxu0 0.0
    %241 = vmatpush.msra.mxu0 0.0
    %242 = vmatpush.msra.mxu0 0.0
    %243 = vmatpush.msra.mxu0 0.0
    %244 = vmatpush.msra.mxu0 0.0
    %245 = vmatpush.msra.mxu0 0.0
    %246 = vmatpush.msra.mxu0 0.0
    %247 = vmatpush.msra.mxu0 0.0
    %248 = vmatpush.msra.mxu0 0.0
    %249 = vmatpush.msra.mxu0 0.0
    %250 = vmatpush.msra.mxu0 0.0
    %251 = vmatpush.msra.mxu0 %v234
    %252 = vmatmul.f32.gmra.mxu0 %v231
    %v253 = vpop.f32.mrf.mxu0
    %v254 = vadd.f32 0.0, %v253
    %255 = vdwg.mxu0
    %v256 = vadd.f32 %v197, %v254
    %vm257 = vcmp.ge.f32.partialorder %v256, 0.0
    %v258 = vmul.f32 %v256, 0.2
    %v259 = vsel %vm257, %v256, %v258
    %v260 = vld [vmem:[%s2] sm:$0xff]
    %v261 = vld [vmem:[%s2 + $0x8] sm:$0xff]
    %v262 = vld [vmem:[%s2 + $0x10] sm:$0xff]
    %v263 = vld [vmem:[%s2 + $0x18] sm:$0xff]
    %vm264 = vcmask 261120
    %v266 = vsel %vm264, %v259, 0
    %268 = vmatpush.msra.mxu0 0.0
    %269 = vmatpush.msra.mxu0 0.0
    %270 = vmatpush.msra.mxu0 0.0
    %271 = vmatpush.msra.mxu0 0.0
    %272 = vmatpush.msra.mxu0 0.0
    %273 = vmatpush.msra.mxu0 0.0
    %274 = vmatpush.msra.mxu0 0.0
    %275 = vmatpush.msra.mxu0 0.0
    %276 = vmatpush.msra.mxu0 0.0
    %277 = vmatpush.msra.mxu0 0.0
    %278 = vmatpush.msra.mxu0 0.0
    %279 = vmatpush.msra.mxu0 0.0
    %280 = vmatpush.msra.mxu0 %v263
    %281 = vmatpush.msra.mxu0 %v262
    %282 = vmatpush.msra.mxu0 %v261
    %283 = vmatpush.msra.mxu0 %v260
    %284 = vmatmul.f32.gmra.mxu0 %v266
    %v285 = vpop.f32.mrf.mxu0
    %v286 = vadd.f32 0.0, %v285
    %287 = vdwg.mxu0
    %v288 = vld [vmem:[%s5] sm:$0xff]
    %v289 = vld [vmem:[%s5 + $0x8] sm:$0xff]
    %s290 = scalar_lea.vmem %s2, 32
    %v291 = vld [vmem:[%s290] sm:$0xff]
    %v292 = vld [vmem:[%s290 + $0x8] sm:$0xff]
    %v293 = vld [vmem:[%s290 + $0x10] sm:$0xff]
    %v294 = vld [vmem:[%s290 + $0x18] sm:$0xff]
    %295 = vmatpush.msra.mxu0 0.0
    %296 = vmatpush.msra.mxu0 0.0
    %297 = vmatpush.msra.mxu0 0.0
    %298 = vmatpush.msra.mxu0 0.0
    %299 = vmatpush.msra.mxu0 0.0
    %300 = vmatpush.msra.mxu0 0.0
    %301 = vmatpush.msra.mxu0 0.0
    %302 = vmatpush.msra.mxu0 0.0
    %303 = vmatpush.msra.mxu0 0.0
    %304 = vmatpush.msra.mxu0 0.0
    %305 = vmatpush.msra.mxu0 0.0
    %306 = vmatpush.msra.mxu0 0.0
    %307 = vmatpush.msra.mxu0 %v294
    %308 = vmatpush.msra.mxu0 %v293
    %309 = vmatpush.msra.mxu0 %v292
    %310 = vmatpush.msra.mxu0 %v291
    %311 = vmatmul.f32.gmra.mxu0 %v266
    %v312 = vpop.f32.mrf.mxu0
    %v313 = vadd.f32 0.0, %v312
    %314 = vdwg.mxu0
    %s315 = scalar_lea.vmem %s5, 16
    %v316 = vld [vmem:[%s315] sm:$0xff]
    %v317 = vld [vmem:[%s315 + $0x8] sm:$0xff]
    %vm318 = vcmask 64512
    %v320 = vsel %vm318, %v316, 0
    %v323 = vsel %vm318, %v317, 0
    %325 = vmatpush.msra.mxu0 0.0
    %326 = vmatpush.msra.mxu0 0.0
    %327 = vmatpush.msra.mxu0 0.0
    %328 = vmatpush.msra.mxu0 0.0
    %329 = vmatpush.msra.mxu0 0.0
    %330 = vmatpush.msra.mxu0 0.0
    %331 = vmatpush.msra.mxu0 0.0
    %332 = vmatpush.msra.mxu0 0.0
    %333 = vmatpush.msra.mxu0 0.0
    %334 = vmatpush.msra.mxu0 0.0
    %335 = vmatpush.msra.mxu0 0.0
    %336 = vmatpush.msra.mxu0 0.0
    %337 = vmatpush.msra.mxu0 0.0
    %338 = vmatpush.msra.mxu0 0.0
    %339 = vmatpush.msra.mxu0 0.0
    %340 = vmatpush.msra.mxu0 %v313
    %341 = vmatmul.f32.gmra.mxu0 %v320
    %v342 = vpop.f32.mrf.mxu0
    %v343 = vadd.f32 0.0, %v342
    %344 = vmatmul.f32.gmra.mxu0 %v323
    %v345 = vpop.f32.mrf.mxu0
    %v346 = vadd.f32 0.0, %v345
    %347 = vdwg.mxu0
    %v349 = vsel %vm318, %v288, 0
    %v352 = vsel %vm318, %v289, 0
    %354 = vmatpush.msra.mxu0 0.0
    %355 = vmatpush.msra.mxu0 0.0
    %356 = vmatpush.msra.mxu0 0.0
    %357 = vmatpush.msra.mxu0 0.0
    %358 = vmatpush.msra.mxu0 0.0
    %359 = vmatpush.msra.mxu0 0.0
    %360 = vmatpush.msra.mxu0 0.0
    %361 = vmatpush.msra.mxu0 0.0
    %362 = vmatpush.msra.mxu0 0.0
    %363 = vmatpush.msra.mxu0 0.0
    %364 = vmatpush.msra.mxu0 0.0
    %365 = vmatpush.msra.mxu0 0.0
    %366 = vmatpush.msra.mxu0 0.0
    %367 = vmatpush.msra.mxu0 0.0
    %368 = vmatpush.msra.mxu0 0.0
    %369 = vmatpush.msra.mxu0 %v286
    %370 = vmatmul.f32.gmra.mxu0 %v349
    %v371 = vpop.f32.mrf.mxu0
    %v372 = vadd.f32 %v343, %v371
    %373 = vmatmul.f32.gmra.mxu0 %v352
    %v374 = vpop.f32.mrf.mxu0
    %v375 = vadd.f32 %v346, %v374
    %376 = vdwg.mxu0
    %s377 = scalar_lea.vmem %s2, 64
    %v378 = vld [vmem:[%s377] sm:$0xff]
    %v379 = vld [vmem:[%s377 + $0x8] sm:$0xff]
    %v380 = vld [vmem:[%s377 + $0x10] sm:$0xff]
    %v381 = vld [vmem:[%s377 + $0x18] sm:$0xff]
    %382 = vmatpush.msra.mxu0 0.0
    %383 = vmatpush.msra.mxu0 0.0
    %384 = vmatpush.msra.mxu0 0.0
    %385 = vmatpush.msra.mxu0 0.0
    %386 = vmatpush.msra.mxu0 0.0
    %387 = vmatpush.msra.mxu0 0.0
    %388 = vmatpush.msra.mxu0 0.0
    %389 = vmatpush.msra.mxu0 0.0
    %390 = vmatpush.msra.mxu0 0.0
    %391 = vmatpush.msra.mxu0 0.0
    %392 = vmatpush.msra.mxu0 0.0
    %393 = vmatpush.msra.mxu0 0.0
    %394 = vmatpush.msra.mxu0 %v381
    %395 = vmatpush.msra.mxu0 %v380
    %396 = vmatpush.msra.mxu0 %v379
    %397 = vmatpush.msra.mxu0 %v378
    %398 = vmatmul.f32.gmra.mxu0 %v266
    %v399 = vpop.f32.mrf.mxu0
    %v400 = vadd.f32 0.0, %v399
    %401 = vdwg.mxu0
    %s402 = scalar_lea.vmem %s5, 32
    %v403 = vld [vmem:[%s402] sm:$0xff]
    %v404 = vld [vmem:[%s402 + $0x8] sm:$0xff]
    %v406 = vsel %vm318, %v403, 0
    %v409 = vsel %vm318, %v404, 0
    %411 = vmatpush.msra.mxu0 0.0
    %412 = vmatpush.msra.mxu0 0.0
    %413 = vmatpush.msra.mxu0 0.0
    %414 = vmatpush.msra.mxu0 0.0
    %415 = vmatpush.msra.mxu0 0.0
    %416 = vmatpush.msra.mxu0 0.0
    %417 = vmatpush.msra.mxu0 0.0
    %418 = vmatpush.msra.mxu0 0.0
    %419 = vmatpush.msra.mxu0 0.0
    %420 = vmatpush.msra.mxu0 0.0
    %421 = vmatpush.msra.mxu0 0.0
    %422 = vmatpush.msra.mxu0 0.0
    %423 = vmatpush.msra.mxu0 0.0
    %424 = vmatpush.msra.mxu0 0.0
    %425 = vmatpush.msra.mxu0 0.0
    %426 = vmatpush.msra.mxu0 %v400
    %427 = vmatmul.f32.gmra.mxu0 %v406
    %v428 = vpop.f32.mrf.mxu0
    %v429 = vadd.f32 0.0, %v428
    %430 = vmatmul.f32.gmra.mxu0 %v409
    %v431 = vpop.f32.mrf.mxu0
    %v432 = vadd.f32 0.0, %v431
    %433 = vdwg.mxu0
    %v434 = vadd.f32 %v372, %v429
    %v435 = vadd.f32 %v375, %v432
    %v436 = vld [vmem:[%s6] sm:$0xff]
    %v437 = vld [vmem:[%s6 + $0x8] sm:$0xff]
    %v438 = vld [vmem:[%s7] sm:$0xff]
    %v439 = vld [vmem:[%s7 + $0x8] sm:$0xff]
    %vm440 = vcmask 130048
    %v441 = vsel %vm440, %v434, 0.0
    %442 = vadd.xlane.f32.xlu0 %v441
    %v443 = vpop.xlane.xlu0 %442
    %v444 = vsel %vm440, %v435, 0.0
    %445 = vadd.xlane.f32.xlu0 %v444
    %v446 = vpop.xlane.xlu0 %445
    %v447 = vrcp.pop 16.0
    %v448 = vmul.f32 16.0, %v447
    %v449 = vsub.f32 1.0, %v448
    %v450 = vmul.f32 %v447, %v449
    %v451 = vadd.f32 %v447, %v450
    %vm452 = vweird.f32 %v447
    %v453 = vsel %vm452, %v447, %v451
    %v454 = vmul.f32 %v443, %v453
    %v455 = vmul.f32 %v446, %v453
    %v456 = vsub.f32 %v434, %v454
    %v457 = vsub.f32 %v435, %v455
    %v458 = vmul.f32 %v456, %v456
    %v459 = vmul.f32 %v457, %v457
    %v460 = vsel %vm440, %v458, 0.0
    %461 = vadd.xlane.f32.xlu0 %v460
    %v462 = vpop.xlane.xlu0 %461
    %v463 = vsel %vm440, %v459, 0.0
    %464 = vadd.xlane.f32.xlu0 %v463
    %v465 = vpop.xlane.xlu0 %464
    %v466 = vmul.f32 %v462, %v453
    %v467 = vmul.f32 %v465, %v453
    %v468 = vadd.f32 %v466, 1e-05
    %v469 = vadd.f32 %v467, 1e-05
    %v470 = vrsqrt.pop %v468
    %v471 = vmul.f32 %v470, %v468
    %v472 = vmul.f32 %v471, %v470
    %v473 = vmul.f32 0.5, %v472
    %v474 = vsub.f32 1.5, %v473
    %v475 = vmul.f32 %v470, %v474
    %vm476 = vweird.f32 %v468
    %vm477 = vweird.f32 %v470
    %vm478 = vmor %vm476, %vm477
    %v479 = vsel %vm478, %v470, %v475
    %v480 = vrsqrt.pop %v469
    %v481 = vmul.f32 %v480, %v469
    %v482 = vmul.f32 %v481, %v480
    %v483 = vmul.f32 0.5, %v482
    %v484 = vsub.f32 1.5, %v483
    %v485 = vmul.f32 %v480, %v484
    %vm486 = vweird.f32 %v469
    %vm487 = vweird.f32 %v480
    %vm488 = vmor %vm486, %vm487
    %v489 = vsel %vm488, %v480, %v485
    %v490 = vmul.f32 %v456, %v479
    %v491 = vmul.f32 %v457, %v489
    %493 = vset.pattern.permute.xlu0 0
    %494 = vperm.xlu0 %493, %v436
    %v495 = vpop.permute.xlu0 %494
    %498 = vset.pattern.permute.xlu0 0
    %499 = vperm.xlu0 %498, %v437
    %v500 = vpop.permute.xlu0 %499
    %v502 = vmul.f32 %v490, %v495
    %v503 = vmul.f32 %v491, %v500
    %505 = vset.pattern.permute.xlu0 0
    %506 = vperm.xlu0 %505, %v438
    %v507 = vpop.permute.xlu0 %506
    %510 = vset.pattern.permute.xlu0 0
    %511 = vperm.xlu0 %510, %v439
    %v512 = vpop.permute.xlu0 %511
    %v514 = vadd.f32 %v502, %v507
    %v515 = vadd.f32 %v503, %v512
    %vm516 = vcmp.ge.f32.partialorder %v514, 0.0
    %vm517 = vcmp.ge.f32.partialorder %v515, 0.0
    %v518 = vmul.f32 %v514, 0.2
    %v519 = vmul.f32 %v515, 0.2
    %v520 = vsel %vm516, %v514, %v518
    %v521 = vsel %vm517, %v515, %v519
    %v522 = vld [vmem:[%s8] sm:$0x1]
    %v524 = vsel %vm440, %v522, 0
    %526 = vmatpush.msra.mxu0 0.0
    %527 = vmatpush.msra.mxu0 0.0
    %528 = vmatpush.msra.mxu0 0.0
    %529 = vmatpush.msra.mxu0 0.0
    %530 = vmatpush.msra.mxu0 0.0
    %531 = vmatpush.msra.mxu0 0.0
    %532 = vmatpush.msra.mxu0 0.0
    %533 = vmatpush.msra.mxu0 0.0
    %534 = vmatpush.msra.mxu0 0.0
    %535 = vmatpush.msra.mxu0 0.0
    %536 = vmatpush.msra.mxu0 0.0
    %537 = vmatpush.msra.mxu0 0.0
    %538 = vmatpush.msra.mxu0 0.0
    %539 = vmatpush.msra.mxu0 0.0
    %540 = vmatpush.msra.mxu0 %v521
    %541 = vmatpush.msra.mxu0 %v520
    %542 = vmatmul.f32.gmra.mxu0 %v524
    %v543 = vpop.f32.mrf.mxu0
    %v544 = vadd.f32 0.0, %v543
    %545 = vdwg.mxu0
    %v546 = vld [vmem:[#allocation6] sm:$0xff]
    %v547 = vld [vmem:[#allocation6 + $0x8] sm:$0xff]
    %s548 = scalar_lea.vmem %s8, 1
    %v549 = vld [vmem:[%s548] sm:$0x1]
    %v551 = vsel %vm440, %v549, 0
    %553 = vmatpush.msra.mxu0 0.0
    %554 = vmatpush.msra.mxu0 0.0
    %555 = vmatpush.msra.mxu0 0.0
    %556 = vmatpush.msra.mxu0 0.0
    %557 = vmatpush.msra.mxu0 0.0
    %558 = vmatpush.msra.mxu0 0.0
    %559 = vmatpush.msra.mxu0 0.0
    %560 = vmatpush.msra.mxu0 0.0
    %561 = vmatpush.msra.mxu0 0.0
    %562 = vmatpush.msra.mxu0 0.0
    %563 = vmatpush.msra.mxu0 0.0
    %564 = vmatpush.msra.mxu0 0.0
    %565 = vmatpush.msra.mxu0 0.0
    %566 = vmatpush.msra.mxu0 0.0
    %567 = vmatpush.msra.mxu0 %v521
    %568 = vmatpush.msra.mxu0 %v520
    %569 = vmatmul.f32.gmra.mxu0 %v551
    %v570 = vpop.f32.mrf.mxu0
    %v571 = vadd.f32 0.0, %v570
    %572 = vdwg.mxu0
    %s573 = scalar_lea.vmem [#allocation6], 16
    %v574 = vld [vmem:[%s573] sm:$0xff]
    %v575 = vld [vmem:[%s573 + $0x8] sm:$0xff]
    %v577 = vsel %vm440, %v571, 0
    %579 = vmatpush.msra.mxu0 0.0
    %580 = vmatpush.msra.mxu0 0.0
    %581 = vmatpush.msra.mxu0 0.0
    %582 = vmatpush.msra.mxu0 0.0
    %583 = vmatpush.msra.mxu0 0.0
    %584 = vmatpush.msra.mxu0 0.0
    %585 = vmatpush.msra.mxu0 0.0
    %586 = vmatpush.msra.mxu0 0.0
    %587 = vmatpush.msra.mxu0 0.0
    %588 = vmatpush.msra.mxu0 0.0
    %589 = vmatpush.msra.mxu0 0.0
    %590 = vmatpush.msra.mxu0 0.0
    %591 = vmatpush.msra.mxu0 0.0
    %592 = vmatpush.msra.mxu0 0.0
    %593 = vmatpush.msra.mxu0 %v575
    %594 = vmatpush.msra.mxu0 %v574
    %595 = vmatmul.f32.gmra.mxu0 %v577
    %v596 = vpop.f32.mrf.mxu0
    %v597 = vadd.f32 0.0, %v596
    %598 = vdwg.mxu0
    %v600 = vsel %vm440, %v544, 0
    %602 = vmatpush.msra.mxu0 0.0
    %603 = vmatpush.msra.mxu0 0.0
    %604 = vmatpush.msra.mxu0 0.0
    %605 = vmatpush.msra.mxu0 0.0
    %606 = vmatpush.msra.mxu0 0.0
    %607 = vmatpush.msra.mxu0 0.0
    %608 = vmatpush.msra.mxu0 0.0
    %609 = vmatpush.msra.mxu0 0.0
    %610 = vmatpush.msra.mxu0 0.0
    %611 = vmatpush.msra.mxu0 0.0
    %612 = vmatpush.msra.mxu0 0.0
    %613 = vmatpush.msra.mxu0 0.0
    %614 = vmatpush.msra.mxu0 0.0
    %615 = vmatpush.msra.mxu0 0.0
    %616 = vmatpush.msra.mxu0 %v547
    %617 = vmatpush.msra.mxu0 %v546
    %618 = vmatmul.f32.gmra.mxu0 %v600
    %v619 = vpop.f32.mrf.mxu0
    %v620 = vadd.f32 %v597, %v619
    %621 = vdwg.mxu0
    %s622 = scalar_lea.vmem %s8, 2
    %v623 = vld [vmem:[%s622] sm:$0x1]
    %v625 = vsel %vm440, %v623, 0
    %627 = vmatpush.msra.mxu0 0.0
    %628 = vmatpush.msra.mxu0 0.0
    %629 = vmatpush.msra.mxu0 0.0
    %630 = vmatpush.msra.mxu0 0.0
    %631 = vmatpush.msra.mxu0 0.0
    %632 = vmatpush.msra.mxu0 0.0
    %633 = vmatpush.msra.mxu0 0.0
    %634 = vmatpush.msra.mxu0 0.0
    %635 = vmatpush.msra.mxu0 0.0
    %636 = vmatpush.msra.mxu0 0.0
    %637 = vmatpush.msra.mxu0 0.0
    %638 = vmatpush.msra.mxu0 0.0
    %639 = vmatpush.msra.mxu0 0.0
    %640 = vmatpush.msra.mxu0 0.0
    %641 = vmatpush.msra.mxu0 %v521
    %642 = vmatpush.msra.mxu0 %v520
    %643 = vmatmul.f32.gmra.mxu0 %v625
    %v644 = vpop.f32.mrf.mxu0
    %v645 = vadd.f32 0.0, %v644
    %646 = vdwg.mxu0
    %s647 = scalar_lea.vmem [#allocation6], 32
    %v648 = vld [vmem:[%s647] sm:$0xff]
    %v649 = vld [vmem:[%s647 + $0x8] sm:$0xff]
    %v651 = vsel %vm440, %v645, 0
    %653 = vmatpush.msra.mxu0 0.0
    %654 = vmatpush.msra.mxu0 0.0
    %655 = vmatpush.msra.mxu0 0.0
    %656 = vmatpush.msra.mxu0 0.0
    %657 = vmatpush.msra.mxu0 0.0
    %658 = vmatpush.msra.mxu0 0.0
    %659 = vmatpush.msra.mxu0 0.0
    %660 = vmatpush.msra.mxu0 0.0
    %661 = vmatpush.msra.mxu0 0.0
    %662 = vmatpush.msra.mxu0 0.0
    %663 = vmatpush.msra.mxu0 0.0
    %664 = vmatpush.msra.mxu0 0.0
    %665 = vmatpush.msra.mxu0 0.0
    %666 = vmatpush.msra.mxu0 0.0
    %667 = vmatpush.msra.mxu0 %v649
    %668 = vmatpush.msra.mxu0 %v648
    %669 = vmatmul.f32.gmra.mxu0 %v651
    %v670 = vpop.f32.mrf.mxu0
    %v671 = vadd.f32 0.0, %v670
    %672 = vdwg.mxu0
    %v673 = vadd.f32 %v620, %v671
    %v674 = vld [vmem:[#allocation2] sm:$0x1]
    %v675 = vld [vmem:[#allocation3] sm:$0x1]
    %vm676 = vcmask 57344
    %v677 = vsel %vm676, %v673, 0.0
    %678 = vadd.xlane.f32.xlu0 %v677
    %v679 = vpop.xlane.xlu0 %678
    %v680 = vrcp.pop 8.0
    %v681 = vmul.f32 8.0, %v680
    %v682 = vsub.f32 1.0, %v681
    %v683 = vmul.f32 %v680, %v682
    %v684 = vadd.f32 %v680, %v683
    %vm685 = vweird.f32 %v680
    %v686 = vsel %vm685, %v680, %v684
    %v687 = vmul.f32 %v679, %v686
    %v688 = vsub.f32 %v673, %v687
    %v689 = vmul.f32 %v688, %v688
    %v690 = vsel %vm676, %v689, 0.0
    %691 = vadd.xlane.f32.xlu0 %v690
    %v692 = vpop.xlane.xlu0 %691
    %v693 = vmul.f32 %v692, %v686
    %v694 = vadd.f32 %v693, 1e-05
    %v695 = vrsqrt.pop %v694
    %v696 = vmul.f32 %v695, %v694
    %v697 = vmul.f32 %v696, %v695
    %v698 = vmul.f32 0.5, %v697
    %v699 = vsub.f32 1.5, %v698
    %v700 = vmul.f32 %v695, %v699
    %vm701 = vweird.f32 %v694
    %vm702 = vweird.f32 %v695
    %vm703 = vmor %vm701, %vm702
    %v704 = vsel %vm703, %v695, %v700
    %v705 = vmul.f32 %v688, %v704
    %707 = vset.pattern.permute.xlu0 0
    %708 = vperm.xlu0 %707, %v674
    %v709 = vpop.permute.xlu0 %708
    %v711 = vperm.slane %v709, 0
    %v712 = vmul.f32 %v705, %v711
    %714 = vset.pattern.permute.xlu0 0
    %715 = vperm.xlu0 %714, %v675
    %v716 = vpop.permute.xlu0 %715
    %v718 = vperm.slane %v716, 0
    %v719 = vadd.f32 %v712, %v718
    %vm720 = vcmp.ge.f32.partialorder %v719, 0.0
    %v721 = vmul.f32 %v719, 0.2
    %v722 = vsel %vm720, %v719, %v721
    %v723 = vld [vmem:[%s11] sm:$0xff]
    %v724 = vld [vmem:[%s12] sm:$0x1]
    %v726 = vsel %vm318, %v722, 0
    %728 = vmatpush.msra.mxu0 0.0
    %729 = vmatpush.msra.mxu0 0.0
    %730 = vmatpush.msra.mxu0 0.0
    %731 = vmatpush.msra.mxu0 0.0
    %732 = vmatpush.msra.mxu0 0.0
    %733 = vmatpush.msra.mxu0 0.0
    %734 = vmatpush.msra.mxu0 0.0
    %735 = vmatpush.msra.mxu0 0.0
    %736 = vmatpush.msra.mxu0 0.0
    %737 = vmatpush.msra.mxu0 0.0
    %738 = vmatpush.msra.mxu0 0.0
    %739 = vmatpush.msra.mxu0 0.0
    %740 = vmatpush.msra.mxu0 0.0
    %741 = vmatpush.msra.mxu0 0.0
    %742 = vmatpush.msra.mxu0 0.0
    %743 = vmatpush.msra.mxu0 %v723
    %744 = vmatmul.f32.gmra.mxu0 %v726
    %v745 = vpop.f32.mrf.mxu0
    %v746 = vadd.f32 %v724, %v745
    %747 = vdwg.mxu0
    %vm748 = vcmp.ge.f32.partialorder %v746, 0.0
    %v749 = vmul.f32 %v746, 0.2
    %v750 = vsel %vm748, %v746, %v749
    %vm751 = vcmask 122880
    %752 = vst.msk [vmem:[%s13] sm:$0x1] %vm751, %v750
    // Predicated region
    $region62: #{encoder_forward.1} parent=1 // pred_check
      _
    $region63: #{encoder_forward.1} parent=1 // pred_check_branch
      %754 = sbr.rel (0) target = $region65
    $region64: #{encoder_forward.1} parent=1 // pred_region
      _
    $region65: #{encoder_forward.1} parent=1 // pred_fallthru
      _
    // Predicated region
    $region66: #{encoder_forward.1} parent=1 // pred_check
      _
    $region67: #{encoder_forward.1} parent=1 // pred_check_branch
      %756 = sbr.rel (0) target = $region69
    $region68: #{encoder_forward.1} parent=1 // pred_region
      _
    $region69: #{encoder_forward.1} parent=1 // pred_fallthru
      _
    %757 = vsyncpa [#allocation5], 1
    %758 = vsyncpa [#allocation7], 1

</llo_original>
